<compile_context>
chip_gen: v5e
topology: v5e:2x2
jax: 0.10.0
libtpu: 0.0.40
codegen_flags: <defaults>
</compile_context>

<pallas_src>
import functools
import math

import jax
import jax.numpy as jnp
from jax.experimental import pallas as pl
from jax.experimental.pallas import tpu as pltpu


def _attn_kernel_single(xp_ref, xv_ref, o_ref):
    """Single kv-step path: full softmax of one (bb, M, M) score block.

    xp_ref: (bb, M, R)   bf16  xQ/sqrt(d) (query AND key side, same block)
    xv_ref: (bb, M, D+1) bf16  [x | 1]  (ones column carries the row-sum)
    o_ref:  (bb, M, D)
    """
    D = o_ref.shape[-1]
    xp = xp_ref[...]
    # Scores in NT form on the MXU (bf16 operands, f32 accumulation).
    s = jnp.einsum('bqr,bkr->bqk', xp, xp, preferred_element_type=jnp.float32)
    p = jnp.exp(s - s.max(axis=-1, keepdims=True))            # f32 exp/max
    # PV matmul also produces the softmax denominator in column D (ones col).
    pv = jnp.einsum('bqk,bkd->bqd', p.astype(xv_ref.dtype), xv_ref[...],
                    preferred_element_type=jnp.float32)
    inv_l = pl.reciprocal(pv[..., D:], approx=True)            # EUP, ~free
    o_ref[...] = (pv[..., :D] * inv_l).astype(o_ref.dtype)


def _attn_kernel_tiled(xq_ref, xk_ref, xv_ref, o_ref, m_sc, acc_sc):
    """Online-softmax path, kv axis = grid axis 2 (innermost, 'arbitrary').

    xq_ref: (bb, tq, R)   bf16  query-side xQ/sqrt(d) (constant along kv)
    xk_ref: (bb, tk, R)   bf16  key-side xQ/sqrt(d)
    xv_ref: (bb, tk, D+1) bf16  [x | 1]
    o_ref:  (bb, tq, D)
    m_sc:   (bb, tq, 1)   f32   running max
    acc_sc: (bb, tq, D+1) f32   running [p @ V | sum(p)]
    """
    D = o_ref.shape[-1]
    ki = pl.program_id(2)

    @pl.when(ki == 0)
    def _init():
        m_sc[...] = jnp.full_like(m_sc, -jnp.inf)
        acc_sc[...] = jnp.zeros_like(acc_sc)

    s = jnp.einsum('bqr,bkr->bqk', xq_ref[...], xk_ref[...],
                   preferred_element_type=jnp.float32)         # (bb, tq, tk) f32
    m_prev = m_sc[...]
    m_new = jnp.maximum(m_prev, s.max(axis=-1, keepdims=True))
    alpha = jnp.exp(m_prev - m_new)                            # f32 (v5e: no bf16 EUP)
    p = jnp.exp(s - m_new)                                     # f32
    pv = jnp.einsum('bqk,bkd->bqd', p.astype(xv_ref.dtype), xv_ref[...],
                    preferred_element_type=jnp.float32)        # (bb, tq, D+1)
    acc_sc[...] = alpha * acc_sc[...] + pv                     # rescales [acc | l] together
    m_sc[...] = m_new

    @pl.when(ki == pl.num_programs(2) - 1)
    def _finalize():
        acc = acc_sc[...]
        inv_l = pl.reciprocal(acc[..., D:], approx=True)
        o_ref[...] = (acc[..., :D] * inv_l).astype(o_ref.dtype)


def _vmem_params():
    """(vmem_limit_bytes, tile_cap) per TPU generation; conservative fallback."""
    try:
        cap = int(pltpu.get_tpu_info().vmem_capacity_bytes)
    except Exception:
        cap = 0
    if cap >= 100 * 1024 * 1024:            # v5e / v6e: 128 MiB physical VMEM
        return 64 * 1024 * 1024, 1024
    return 32 * 1024 * 1024, 512            # v7x (64 MiB) / unknown: conservative


@functools.partial(jax.jit, static_argnums=(2,))
def attention_forward(x, Q, d):
    B, M, D = x.shape
    Dq, R = Q.shape
    assert Dq == D
    inv_sqrt_d = 1.0 / math.sqrt(float(d))

    # Hoisted projection: xQ = x @ (Q / sqrt(d)) computed ONCE (tiny B*M*D*R
    # matmul) and streamed to the kernel as bf16 for native-MXU score matmuls.
    xproj = (jnp.einsum('bmd,dr->bmr', x, Q, preferred_element_type=jnp.float32)
             * inv_sqrt_d).astype(jnp.bfloat16)

    # Value stream with a fused ones column: the PV matmul then yields the
    # softmax denominator in column D for free.
    xv_aug = jnp.concatenate(
        [x, jnp.ones((B, M, 1), x.dtype)], axis=-1).astype(jnp.bfloat16)

    vmem_limit, tile_cap = _vmem_params()

    def _params(sem):
        return pltpu.CompilerParams(dimension_semantics=sem,
                                    vmem_limit_bytes=vmem_limit)

    if M <= 512 or M % 128 != 0:
        # ---- single kv-step fast path (also handles ragged M) ----
        # TODO(synk): masked partial kv/query tiles for large M not divisible by
        # 128; this fallback needs the whole (M, M) score block of a batch slice.
        if M * M * 4 > 8 * 1024 * 1024:
            raise NotImplementedError(
                "M > 512 must be a multiple of 128 (no masked kv tiles yet)")
        # Batch as much as fits a ~2 MiB score workspace per step, but keep the
        # leading parallel grid extent >= 2 so v7x's 2nd TensorCore has work.
        bb = 1
        for cand in range(max(1, B // 2), 0, -1):
            if B % cand == 0 and cand * M * M * 4 <= 2 * 1024 * 1024:
                bb = cand
                break
        return pl.pallas_call(
            _attn_kernel_single,
            out_shape=jax.ShapeDtypeStruct((B, M, D), x.dtype),
            grid=(B // bb,),
            in_specs=[
                pl.BlockSpec((bb, M, R), lambda b: (b, 0, 0)),
                pl.BlockSpec((bb, M, D + 1), lambda b: (b, 0, 0)),
            ],
            out_specs=pl.BlockSpec((bb, M, D), lambda b: (b, 0, 0)),
            compiler_params=_params(("parallel",)),
        )(xproj, xv_aug)

    # ---- tiled online-softmax path (large M, multiple of 128) ----
    tile = 128
    for t in (tile_cap, 512, 256, 128):
        if t <= tile_cap and M % t == 0:
            tile = t
            break
    tq = tk = tile
    bb = 1
    return pl.pallas_call(
        _attn_kernel_tiled,
        out_shape=jax.ShapeDtypeStruct((B, M, D), x.dtype),
        grid=(B // bb, M // tq, M // tk),
        in_specs=[
            # query-side projections: constant along the kv axis
            pl.BlockSpec((bb, tq, R), lambda b, qi, ki: (b, qi, 0)),
            # key-side projections: march along the kv axis
            pl.BlockSpec((bb, tk, R), lambda b, qi, ki: (b, ki, 0)),
            # values (+ ones column): march along the kv axis
            pl.BlockSpec((bb, tk, D + 1), lambda b, qi, ki: (b, ki, 0)),
        ],
        out_specs=pl.BlockSpec((bb, tq, D), lambda b, qi, ki: (b, qi, 0)),
        scratch_shapes=[
            pltpu.VMEM((bb, tq, 1), jnp.float32),       # running max m_i
            pltpu.VMEM((bb, tq, D + 1), jnp.float32),   # running [acc | l]
        ],
        compiler_params=_params(("parallel", "parallel", "arbitrary")),
    )(xproj, xproj, xv_aug)


def attention_reference(x, Q, d):
    # Pure-JAX reference mirroring the PyTorch forward.
    xq = jnp.einsum('imk,kl->iml', x, Q / math.sqrt(d))
    s = jnp.einsum('iml,inl->imn', xq, xq)
    p = jax.nn.softmax(s, axis=-1)
    return jnp.einsum('imn,inj->imj', p, x)


if __name__ == "__main__":
    d, r = 32, 4
    k0, k1, k2, k3 = jax.random.split(jax.random.PRNGKey(0), 4)

    # Small shapes consistent with the module: batch=2, seq=8, d=32, r=4.
    B, M = 2, 8
    x = jax.random.normal(k0, (B, M, d), dtype=jnp.float32)
    Q = 0.1 * jax.random.normal(k1, (d, r), dtype=jnp.float32)   # uninformed init

    out = jax.block_until_ready(attention_forward(x, Q, d))
    ref = attention_reference(x, Q, d)
    assert out.shape == (B, M, d)
    # Tolerance covers bf16 MXU operands (f32 accumulation) plus the EUP
    # approximate-reciprocal epilogue; an all-f32/exact-divide path is ~1e-6.
    assert jnp.allclose(out, ref, atol=5e-3, rtol=5e-3), "mismatch (small path)"

    # Also exercise the tiled online-softmax path (M > 512, multiple of 128).
    B2, M2 = 2, 640
    x2 = jax.random.normal(k2, (B2, M2, d), dtype=jnp.float32)
    Q2 = 0.1 * jax.random.normal(k3, (d, r), dtype=jnp.float32)
    out2 = jax.block_until_ready(attention_forward(x2, Q2, d))
    ref2 = attention_reference(x2, Q2, d)
    assert jnp.allclose(out2, ref2, atol=5e-3, rtol=5e-3), "mismatch (tiled path)"

    print("KERNEL_OK")
</pallas_src>

<mosaic_0001>
module attributes {stable_mosaic.version = 11 : i64} {
  func.func @_attn_kernel_single(%arg0: i32, %arg1: memref<1x8x4xbf16, #tpu.memory_space<vmem>>, %arg2: memref<1x8x33xbf16, #tpu.memory_space<vmem>>, %arg3: memref<1x8x32xf32, #tpu.memory_space<vmem>>) attributes {dimension_semantics = [#tpu.dimension_semantics<parallel>], iteration_bounds = array<i64: 2>, scalar_prefetch = 0 : i64, scratch_operands = 0 : i64, tpu.core_type = #tpu.core_type<tc>, window_params = [{transform_indices = @transform_0, window_bounds = array<i64: 1, 8, 4>}, {transform_indices = @transform_1, window_bounds = array<i64: 1, 8, 33>}, {transform_indices = @transform_2, window_bounds = array<i64: 1, 8, 32>}]} {
    %c0 = arith.constant 0 : index
    %c0_0 = arith.constant 0 : index
    %c0_1 = arith.constant 0 : index
    %0 = vector.load %arg1[%c0, %c0_0, %c0_1] : memref<1x8x4xbf16, #tpu.memory_space<vmem>>, vector<1x8x4xbf16>
    "tpu.trace_start"() <{level = 10 : i32, message = "bqr,bkr->bqk"}> : () -> ()
    %cst = arith.constant dense<0.000000e+00> : vector<1x8x8xf32>
    %1 = tpu.matmul %0, %0, %cst {dimension_numbers = #tpu.dot_dimension_numbers<[2], [2], [1], [1], [0, 0, 0, 1, 1, 1], [0], [0]>} : vector<1x8x4xbf16>, vector<1x8x4xbf16>, vector<1x8x8xf32> -> vector<1x8x8xf32>
    "tpu.trace_stop"() : () -> ()
    %cst_2 = arith.constant dense<0xFF800000> : vector<1x8xf32>
    %2 = vector.multi_reduction <maximumf>, %1, %cst_2 [2] : vector<1x8x8xf32> to vector<1x8xf32>
    %3 = vector.shape_cast %2 : vector<1x8xf32> to vector<1x8x1xf32>
    %4 = vector.broadcast %3 : vector<1x8x1xf32> to vector<1x8x8xf32>
    %5 = arith.subf %1, %4 : vector<1x8x8xf32>
    %6 = math.exp %5 : vector<1x8x8xf32>
    %7 = arith.truncf %6 : vector<1x8x8xf32> to vector<1x8x8xbf16>
    %c0_3 = arith.constant 0 : index
    %c0_4 = arith.constant 0 : index
    %c0_5 = arith.constant 0 : index
    %8 = vector.load %arg2[%c0_3, %c0_4, %c0_5] : memref<1x8x33xbf16, #tpu.memory_space<vmem>>, vector<1x8x33xbf16>
    "tpu.trace_start"() <{level = 10 : i32, message = "bqk,bkd->bqd"}> : () -> ()
    %cst_6 = arith.constant dense<0.000000e+00> : vector<1x8x33xf32>
    %9 = tpu.matmul %7, %8, %cst_6 {dimension_numbers = #tpu.dot_dimension_numbers<[2], [1], [1], [2], [0, 0, 0, 1, 1, 2], [0], [0]>} : vector<1x8x8xbf16>, vector<1x8x33xbf16>, vector<1x8x33xf32> -> vector<1x8x33xf32>
    "tpu.trace_stop"() : () -> ()
    %10 = vector.extract_strided_slice %9 {offsets = [0, 0, 32], sizes = [1, 8, 1], strides = [1, 1, 1]} : vector<1x8x33xf32> to vector<1x8x1xf32>
    %11 = tpu.reciprocal %10 {approx = true} : vector<1x8x1xf32> -> vector<1x8x1xf32>
    %12 = vector.extract_strided_slice %9 {offsets = [0, 0, 0], sizes = [1, 8, 32], strides = [1, 1, 1]} : vector<1x8x33xf32> to vector<1x8x32xf32>
    %13 = vector.broadcast %11 : vector<1x8x1xf32> to vector<1x8x32xf32>
    %14 = arith.mulf %12, %13 : vector<1x8x32xf32>
    %c0_7 = arith.constant 0 : index
    %c0_8 = arith.constant 0 : index
    %c0_9 = arith.constant 0 : index
    %15 = vector.load %arg3[%c0_7, %c0_8, %c0_9] : memref<1x8x32xf32, #tpu.memory_space<vmem>>, vector<1x8x32xf32>
    tpu.vector_store %arg3[%c0_7, %c0_8, %c0_9], %14 {strides = array<i32>} : memref<1x8x32xf32, #tpu.memory_space<vmem>>, vector<1x8x32xf32>,
    return
  }
  func.func @transform_0(%arg0: i32) -> (i32, i32, i32) {
    %c0_i32 = arith.constant 0 : i32
    %c0_i32_0 = arith.constant 0 : i32
    %c0_i32_1 = arith.constant 0 : i32
    return %arg0, %c0_i32, %c0_i32_0 : i32, i32, i32
  }
  func.func @transform_1(%arg0: i32) -> (i32, i32, i32) {
    %c0_i32 = arith.constant 0 : i32
    %c0_i32_0 = arith.constant 0 : i32
    %c0_i32_1 = arith.constant 0 : i32
    return %arg0, %c0_i32, %c0_i32_0 : i32, i32, i32
  }
  func.func @transform_2(%arg0: i32) -> (i32, i32, i32) {
    %c0_i32 = arith.constant 0 : i32
    %c0_i32_0 = arith.constant 0 : i32
    %c0_i32_1 = arith.constant 0 : i32
    return %arg0, %c0_i32, %c0_i32_0 : i32, i32, i32
  }
}

</mosaic_0001>

<llo_original>
// kernel: attention_forward.1
$region0: #{attention_forward.1}
  #allocation0 [shape = 'u32[]', space=smem, size = 0x4, offset = 0x4, fixed_abs, tag = 'smem constant byte address 0x4 - core index']
  #allocation1 [shape = 'u32[72,128]{1,0:T(1,128)}', space=vmem, size = 0x9000, scoped, tag = 'internal scratch']
  %s0 = inlined_call_operand.vmem [shape: bf16[2,8,4], index: 0, kind: input, shape index: {}]
  %s1 = inlined_call_operand.vmem [shape: bf16[2,8,33], index: 1, kind: input, shape index: {}]
  %s2 = inlined_call_operand.hbm [shape: f32[2,8,32], index: 2, kind: output, shape index: {}]
  %s3 = sld [smem:[#allocation0]]
  $region41: #{attention_forward.1} parent=0
    _
  %s5 = ssub.s32 1, %s3
  %s6 = scalar_select 0, %s5, %s3
  $region1: #{attention_forward.1} parent=0
    #allocation2 [shape = 'u8[8192]{0}', space=vmem, size = 0x2000, scoped, tag = 'output window, operand 0']
    #allocation3 [shape = 's32[2]{0}', space=sflag, size = 0x8, scoped, tag = 'scoped memory for attention_forward.1']
    %7 = vsyncpa [#allocation3], 0
    %s8 = scalar_lea.sflag [#allocation3], 1
    %9 = vsyncpa %s8, 0
    loop: start=0, step=1, limit=4
    $region2: #{attention_forward.1} parent=1 // loop_pre_header
      _
    $region3: #{attention_forward.1} parent=1 // loop_header
      %s11 = sphi 0, %s15
      %p12 = scmp.ge.s32.totalorder %s11, 4
      %s21 = sphi 0, %s23
      %s24 = sphi 0, %s21
      %s25 = sphi 0, %s24
      %s41 = sphi 0, %s25
      %s47 = sphi 0, %s49
      %s50 = sphi 0, %s47
      %s51 = sphi 0, %s50
      %s67 = sphi 0, %s51
      %s73 = sphi 0, %s75
      %s76 = sphi 0, %s73
      %s77 = sphi 0, %s76
      %s93 = sphi 0, %s77
    $region4: #{attention_forward.1} parent=1 // loop_header_branch
      %14 = sbr.rel (%p12) target = $region8
    $region5: #{attention_forward.1} parent=1 // loop_body
      %s16 = ssub.s32 %s11, 1
      %s17 = ssub.s32 %s11, 2
      %s18 = sadd.s32 %s11, 1
      %s19 = ssub.s32 %s11, %s18
      %p20 = scmp.eq.s32.totalorder %s19, 0
      %s22 = sadd.s32 %s21, 1
      %s23 = scalar_select %p20, %s21, %s22
      %p26 = pneg %p20
      %p27 = scmp.eq.s32.totalorder %s11, 1
      %p28 = por %p26, %p27
      %p29 = scmp.ne.s32.totalorder %s21, %s24
      %p30 = scmp.eq.s32.totalorder %s11, 0
      %p31 = por %p29, %p30
      %p32 = scmp.ne.s32.totalorder %s21, %s24
      %p33 = scmp.eq.s32.totalorder %s16, 1
      %p34 = por %p32, %p33
      %p35 = scmp.ne.s32.totalorder %s24, %s25
      %p36 = scmp.eq.s32.totalorder %s16, 0
      %p37 = por %p35, %p36
      %p38 = scmp.ne.s32.totalorder %s24, %s25
      %p39 = scmp.eq.s32.totalorder %s17, 1
      %p40 = por %p38, %p39
      %p42 = scmp.ne.s32.totalorder %s25, %s41
      %p43 = scmp.eq.s32.totalorder %s17, 0
      %p44 = por %p42, %p43
      %s45 = ssub.s32 %s11, %s18
      %p46 = scmp.eq.s32.totalorder %s45, 0
      %s48 = sadd.s32 %s47, 1
      %s49 = scalar_select %p46, %s47, %s48
      %p52 = pneg %p46
      %p53 = scmp.eq.s32.totalorder %s11, 1
      %p54 = por %p52, %p53
      %p55 = scmp.ne.s32.totalorder %s47, %s50
      %p56 = scmp.eq.s32.totalorder %s11, 0
      %p57 = por %p55, %p56
      %p58 = scmp.ne.s32.totalorder %s47, %s50
      %p59 = scmp.eq.s32.totalorder %s16, 1
      %p60 = por %p58, %p59
      %p61 = scmp.ne.s32.totalorder %s50, %s51
      %p62 = scmp.eq.s32.totalorder %s16, 0
      %p63 = por %p61, %p62
      %p64 = scmp.ne.s32.totalorder %s50, %s51
      %p65 = scmp.eq.s32.totalorder %s17, 1
      %p66 = por %p64, %p65
      %p68 = scmp.ne.s32.totalorder %s51, %s67
      %p69 = scmp.eq.s32.totalorder %s17, 0
      %p70 = por %p68, %p69
      %s71 = ssub.s32 %s11, %s18
      %p72 = scmp.eq.s32.totalorder %s71, 0
      %s74 = sadd.s32 %s73, 1
      %s75 = scalar_select %p72, %s73, %s74
      %p78 = pneg %p72
      %p79 = scmp.eq.s32.totalorder %s11, 1
      %p80 = por %p78, %p79
      %p81 = scmp.ne.s32.totalorder %s73, %s76
      %p82 = scmp.eq.s32.totalorder %s11, 0
      %p83 = por %p81, %p82
      %p84 = scmp.ne.s32.totalorder %s73, %s76
      %p85 = scmp.eq.s32.totalorder %s16, 1
      %p86 = por %p84, %p85
      %p87 = scmp.ne.s32.totalorder %s76, %s77
      %p88 = scmp.eq.s32.totalorder %s16, 0
      %p89 = por %p87, %p88
      %p90 = scmp.ne.s32.totalorder %s76, %s77
      %p91 = scmp.eq.s32.totalorder %s17, 1
      %p92 = por %p90, %p91
      %p94 = scmp.ne.s32.totalorder %s77, %s93
      %p95 = scmp.eq.s32.totalorder %s17, 0
      %p96 = por %p94, %p95
      %p97 = scmp.le.s32.totalorder 1, %s11
      %p98 = scmp.lt.s32.totalorder %s11, 3
      %p99 = pnand %p97, %p98
      %p100 = pneg %p99
      // Predicated region
      $region9: #{attention_forward.1} parent=5 // pred_check
        _
      $region10: #{attention_forward.1} parent=5 // pred_check_branch
        %102 = sbr.rel (%p99) target = $region12
      $region11: #{attention_forward.1} parent=5 // pred_region
        %s103 = ssub.s32 %s11, 1
      $region12: #{attention_forward.1} parent=5 // pred_fallthru
        _
      %p104 = scmp.lt.s32.totalorder %s11, 2
      // Predicated region
      $region13: #{attention_forward.1} parent=5 // pred_check
        %p105 = pneg %p104
      $region14: #{attention_forward.1} parent=5 // pred_check_branch
        %107 = sbr.rel (%p105) target = $region16
      $region15: #{attention_forward.1} parent=5 // pred_region
        // Predicated region
        $region17: #{attention_forward.1} parent=15 // pred_check
          %p108 = pneg %p31
        $region18: #{attention_forward.1} parent=15 // pred_check_branch
          %110 = sbr.rel (%p108) target = $region20
        $region19: #{attention_forward.1} parent=15 // pred_region
          %p111 = scmp.lt.s32.totalorder %s11, 1
          %s112 = scalar_select %p111, %s11, 1
          %s113 = smul.addr %s112, 4
          %s114 = scalar_lea.vmem %s0, %s113
        $region20: #{attention_forward.1} parent=15 // pred_fallthru
          _
        // Predicated region
        $region21: #{attention_forward.1} parent=15 // pred_check
          %p115 = pneg %p57
        $region22: #{attention_forward.1} parent=15 // pred_check_branch
          %117 = sbr.rel (%p115) target = $region24
        $region23: #{attention_forward.1} parent=15 // pred_region
          %p118 = scmp.lt.s32.totalorder %s11, 1
          %s119 = scalar_select %p118, %s11, 1
          %s120 = smul.addr %s119, 4
          %s121 = scalar_lea.vmem %s1, %s120
        $region24: #{attention_forward.1} parent=15 // pred_fallthru
          _
      $region16: #{attention_forward.1} parent=5 // pred_fallthru
        _
      %p122 = scmp.le.s32.totalorder 1, %s11
      %p123 = scmp.lt.s32.totalorder %s11, 3
      %p124 = pnand %p122, %p123
      %p125 = pneg %p124
      // Predicated region
      $region25: #{attention_forward.1} parent=5 // pred_check
        _
      $region26: #{attention_forward.1} parent=5 // pred_check_branch
        %127 = sbr.rel (%p124) target = $region28
      $region27: #{attention_forward.1} parent=5 // pred_region
        %s128 = ssub.s32 %s11, 1
        %p129 = scmp.lt.s32.totalorder %s16, 1
        %s130 = scalar_select %p129, %s16, 1
        %s131 = smul.addr %s130, 4
        %s132 = scalar_lea.vmem %s0, %s131
        %p133 = pneg %p37
        %p134 = pneg %p34
        %p135 = scmp.lt.s32.totalorder %s16, 1
        %s136 = scalar_select %p135, %s16, 1
        %s137 = smul.addr %s136, 4
        %s138 = scalar_lea.vmem %s1, %s137
        %p139 = pneg %p63
        %p140 = pneg %p60
        %p141 = pneg %p89
        %p142 = pneg %p86
        %s143 = sand.u32 %s76, 1
        %s144 = scalar_lea.sflag [#allocation3], %s143
        %s145 = sand.u32 %s76, 1
        %s146 = smul.addr %s145, 8
        %s147 = scalar_lea.vmem [#allocation2], %s146
        %p148 = scmp.lt.s32.totalorder %s16, 1
        %s149 = scalar_select %p148, %s16, 1
        %s150 = smul.addr %s149, 4
        %s151 = scalar_lea.vmem %s0, %s150
        %p152 = scmp.lt.s32.totalorder %s16, 1
        %s153 = scalar_select %p152, %s16, 1
        %s154 = smul.addr %s153, 4
        %s155 = scalar_lea.vmem %s1, %s154
        %v157 = vld [vmem:[%s151] sm:$0xf]
        %vm158 = vcmask 31744
        %v160 = vsel %vm158, %v157, 0
        %162 = vmatpush.bf16.xpose.msra.mxu0 0
        %163 = vmatpush.bf16.xpose.msra.mxu0 0
        %164 = vmatpush.bf16.xpose.msra.mxu0 0
        %165 = vmatpush.bf16.xpose.msra.mxu0 0
        %166 = vmatpush.bf16.xpose.msra.mxu0 0
        %167 = vmatpush.bf16.xpose.msra.mxu0 0
        %168 = vmatpush.bf16.xpose.msra.mxu0 0
        %169 = vmatpush.bf16.xpose.msra.mxu0 %v160
        %170 = vmatmul.bf16.gmra.mxu0 %v160
        %v171 = vpop.f32.mrf.mxu0
        %v172 = vadd.f32 0.0, %v171
        %v173 = vpop.f32.mrf.mxu0
        %174 = vdwg.mxu0
        %vm175 = vcmask 64512
        %v176 = vsel %vm175, %v172, -inf
        %177 = vmax.xlane.f32.xlu0 %v176
        %v178 = vpop.xlane.xlu0 %177
        %v179 = vsub.f32 %v172, %v178
        %v180 = vmul.f32 %v179, 1.442695
        %v181 = vpow.pop %v180
        %v182 = vpack.c.bf16 %v181, %v181
        %v183 = vld [vmem:[%s155] sm:$0xf]
        %v185 = vsel %vm175, %v182, 0
        %vm187 = vcmask 1043456
        %v189 = vsel %vm187, %v183, 0
        %191 = vmatpush.bf16.msra.mxu0 0
        %192 = vmatpush.bf16.msra.mxu0 0
        %193 = vmatpush.bf16.msra.mxu0 0
        %194 = vmatpush.bf16.msra.mxu0 0
        %195 = vmatpush.bf16.msra.mxu0 0
        %196 = vmatpush.bf16.msra.mxu0 0
        %197 = vmatpush.bf16.msra.mxu0 0
        %198 = vmatpush.bf16.msra.mxu0 %v189
        %199 = vmatmul.bf16.gmra.mxu0 %v185
        %v200 = vpop.f32.mrf.mxu0
        %v201 = vadd.f32 0.0, %v200
        %v202 = vpop.f32.mrf.mxu0
        %203 = vdwg.mxu0
        %v204 = vrcp.pop %v201
        %206 = vset.pattern.permute.xlu0 32
        %207 = vperm.xlu0 %206, %v204
        %v208 = vpop.permute.xlu0 %207
        %v210 = vmul.f32 %v201, %v208
        %vm211 = vcmask 261120
        %212 = vst.msk [vmem:[%s147] sm:$0xff] %vm211, %v210
        %s213 = sand.u32 %s76, 1
        %s214 = scalar_lea.sflag [#allocation3], %s213
        %s215 = sand.u32 %s76, 1
        %s216 = smul.addr %s215, 8
        %s217 = scalar_lea.vmem [#allocation2], %s216
        // Predicated region
        $region29: #{attention_forward.1} parent=27 // pred_check
          %p218 = pneg %p86
        $region30: #{attention_forward.1} parent=27 // pred_check_branch
          %220 = sbr.rel (%p218) target = $region32
        $region31: #{attention_forward.1} parent=27 // pred_region
          %222 = vsyncadd %s214, 0
          %s223 = smul.addr %s16, 8
          %s224 = scalar_lea.hbm %s2, %s223
          %s226 = sshll.u32 %s217, 4
          %s227 = int_to_ptr.vmem [resolvable:$true] %s226
          %s228 = sshll.u32 %s224, 4
          %s229 = int_to_ptr.hbm [resolvable:$true] %s228
          %231 = dma.vmem_to_hbm [thread:$0]  %s227, 128, %s229, %s214
        $region32: #{attention_forward.1} parent=27 // pred_fallthru
          _
      $region28: #{attention_forward.1} parent=5 // pred_fallthru
        _
      %p232 = scmp.le.s32.totalorder 2, %s11
      // Predicated region
      $region33: #{attention_forward.1} parent=5 // pred_check
        %p233 = pneg %p232
      $region34: #{attention_forward.1} parent=5 // pred_check_branch
        %235 = sbr.rel (%p233) target = $region36
      $region35: #{attention_forward.1} parent=5 // pred_region
        %s236 = ssub.s32 %s11, 2
        // Predicated region
        $region37: #{attention_forward.1} parent=35 // pred_check
          %p237 = pneg %p92
        $region38: #{attention_forward.1} parent=35 // pred_check_branch
          %239 = sbr.rel (%p237) target = $region40
        $region39: #{attention_forward.1} parent=35 // pred_region
          %s240 = sand.u32 %s77, 1
          %s241 = scalar_lea.sflag [#allocation3], %s240
          %s242 = sand.u32 %s77, 1
          %s243 = smul.addr %s242, 8
          %s244 = scalar_lea.vmem [#allocation2], %s243
          %246 = dma.done %s241, 128
        $region40: #{attention_forward.1} parent=35 // pred_fallthru
          _
      $region36: #{attention_forward.1} parent=5 // pred_fallthru
        _
    $region6: #{attention_forward.1} parent=1 // loop_footer
      %s15 = sadd.s32 1, %s11
    $region7: #{attention_forward.1} parent=1 // loop_footer_branch
      %10 = sbr.rel target = $region3
    $region8: #{attention_forward.1} parent=1 // loop_exit
      _
    %247 = vsyncpa [#allocation3], 1
    %s248 = scalar_lea.sflag [#allocation3], 1
    %249 = vsyncpa %s248, 1

</llo_original>
